<compile_context>
chip_gen: v6e
topology: v6e:2x2x1
jax: 0.10.0
libtpu: 0.0.40
codegen_flags: <defaults>
</compile_context>

<pallas_src>
import functools

import jax
import jax.numpy as jnp
from jax.experimental import pallas as pl
from jax.experimental.pallas import tpu as pltpu


def _round_up(v, m):
    return ((v + m - 1) // m) * m


def _residual_block_kernel_ds(x_ref, w_ref, b_ref, o_ref, *, fp):
    """Downsample path: fused weight slab (F_in, 2*Fp) -> one MXU matmul, split lanes."""
    y = jnp.dot(x_ref[...], w_ref[...], preferred_element_type=jnp.float32) + b_ref[...]
    h = jnp.maximum(y[:, :fp], 0.0)        # fc1 + folded BN -> ReLU (dropout = identity)
    res = y[:, fp:]                        # downsample branch
    o_ref[...] = jnp.maximum(h + res, 0.0).astype(o_ref.dtype)


def _residual_block_kernel_id(x_ref, w_ref, b_ref, o_ref):
    """Identity-residual path: residual add reuses the x tile already in VMEM (no 2nd matmul)."""
    y = jnp.dot(x_ref[...], w_ref[...], preferred_element_type=jnp.float32) + b_ref[...]
    h = jnp.maximum(y, 0.0)
    o_ref[...] = jnp.maximum(h + x_ref[...].astype(jnp.float32), 0.0).astype(o_ref.dtype)


def residual_block(x, w1, b1, gamma, beta, running_mean, running_var,
                   wd=None, bd=None, eps=1e-5):
    """x: (N, F_in); w1/wd stored pre-transposed as (F_in, F_out); the rest (1, F_out)."""
    N, F_in = x.shape
    F_out = w1.shape[1]
    dtype = x.dtype
    itemsize = jnp.dtype(dtype).itemsize

    # ---- host-side BN fold (inference): y = (x@w1 + b1 - mean) * gamma/rsqrt(var+eps) + beta
    scale = gamma * jax.lax.rsqrt(running_var + eps)            # (1, F_out)
    w1f = w1 * scale                                            # (F_in, F_out)
    b1f = (b1 - running_mean) * scale + beta                    # (1, F_out)

    # ---- pad F_out to a multiple of 128 lanes (lane-dense output / unmasked stores)
    Fp = _round_up(F_out, 128)
    pad_f = Fp - F_out
    pad_cols = (lambda a: jnp.pad(a, ((0, 0), (0, pad_f)))) if pad_f else (lambda a: a)

    has_downsample = wd is not None

    if has_downsample:
        # Concatenate both branches' weights along output features -> single matmul.
        W = jnp.concatenate([pad_cols(w1f), pad_cols(wd)], axis=1)   # (F_in, 2*Fp)
        B = jnp.concatenate([pad_cols(b1f), pad_cols(bd)], axis=1)   # (1, 2*Fp)
        Kp = F_in
        xw = x
        Fw = 2 * Fp
        kernel = functools.partial(_residual_block_kernel_ds, fp=Fp)
    else:
        # Identity residual: in_features == out_features. Pad x's feature axis up to Fp so
        # the residual add on the x tile is shape-compatible (zero columns stay zero).
        assert F_in == F_out, "identity residual requires in_features == out_features"
        Kp = Fp
        xw = jnp.pad(x, ((0, 0), (0, pad_f))) if pad_f else x
        W = jnp.pad(pad_cols(w1f), ((0, pad_f), (0, 0))) if pad_f else w1f   # (Fp, Fp)
        B = pad_cols(b1f)                                                    # (1, Fp)
        Fw = Fp
        kernel = _residual_block_kernel_id

    # ---- grid over the batch axis; pad N up to a tile multiple
    TM = 256 if N >= 256 else _round_up(N, 8)
    Np = _round_up(N, TM)
    xp = jnp.pad(xw, ((0, Np - N), (0, 0))) if Np != N else xw

    cost = pl.CostEstimate(
        flops=2 * Np * Kp * Fw,
        transcendentals=0,
        bytes_accessed=(Np * Kp + Kp * Fw + Fw + Np * Fp) * itemsize,
    )

    out = pl.pallas_call(
        kernel,
        out_shape=jax.ShapeDtypeStruct((Np, Fp), dtype),
        grid=(Np // TM,),
        in_specs=[
            pl.BlockSpec((TM, Kp), lambda i: (i, 0)),     # x tile (streamed per grid step)
            pl.BlockSpec((Kp, Fw), lambda i: (0, 0)),     # fused weight slab (resident)
            pl.BlockSpec((1, Fw), lambda i: (0, 0)),      # fused bias slab (resident)
        ],
        out_specs=pl.BlockSpec((TM, Fp), lambda i: (i, 0)),
        compiler_params=pltpu.CompilerParams(dimension_semantics=("parallel",)),
        cost_estimate=cost,
    )(xp, W, B)

    return out[:N, :F_out]


def _reference(x, w1, b1, gamma, beta, running_mean, running_var, wd, bd, eps=1e-5):
    # Plain-JAX reference following the module's op order (fc1 -> BN -> ReLU -> add -> ReLU).
    h = x @ w1 + b1
    h = (h - running_mean) * jax.lax.rsqrt(running_var + eps) * gamma + beta
    h = jnp.maximum(h, 0.0)
    res = (x @ wd + bd) if wd is not None else x
    return jnp.maximum(h + res, 0.0)


if __name__ == "__main__":
    key = jax.random.PRNGKey(0)
    keys = jax.random.split(key, 8)

    # ---------- Case 1: in_features != out_features (downsample branch active) ----------
    N, F_in, F_out = 8, 32, 64

    # kaiming_normal_ on nn.Linear weight (fan_in = in_features): std = sqrt(2 / fan_in).
    # Stored transposed as (F_in, F_out) so the kernel does a plain row-major matmul.
    std = (2.0 / F_in) ** 0.5
    w1 = jax.random.normal(keys[0], (F_in, F_out), jnp.float32) * std
    wd = jax.random.normal(keys[1], (F_in, F_out), jnp.float32) * std

    # Linear bias default init: uniform(-1/sqrt(fan_in), 1/sqrt(fan_in))
    bound = 1.0 / (F_in ** 0.5)
    b1 = jax.random.uniform(keys[2], (1, F_out), jnp.float32, -bound, bound)
    bd = jax.random.uniform(keys[3], (1, F_out), jnp.float32, -bound, bound)

    # BatchNorm1d affine params / running stats (deterministic, nontrivial)
    gamma = 1.0 + 0.1 * jax.random.normal(keys[4], (1, F_out), jnp.float32)
    beta = 0.1 * jax.random.normal(keys[5], (1, F_out), jnp.float32)
    running_mean = 0.05 * jax.random.normal(keys[6], (1, F_out), jnp.float32)
    running_var = jnp.abs(1.0 + 0.1 * jax.random.normal(keys[7], (1, F_out), jnp.float32))

    x = jax.random.normal(jax.random.PRNGKey(42), (N, F_in), jnp.float32)

    out = residual_block(x, w1, b1, gamma, beta, running_mean, running_var, wd, bd)
    out = jax.block_until_ready(out)
    assert out.shape == (N, F_out)
    ref = _reference(x, w1, b1, gamma, beta, running_mean, running_var, wd, bd)
    assert jnp.allclose(out, ref, atol=1e-4, rtol=1e-4), "downsample-path mismatch vs reference"

    # ---------- Case 2: in_features == out_features (identity residual, no 2nd matmul) ----------
    N2, F2 = 8, 64
    std2 = (2.0 / F2) ** 0.5
    w1b = jax.random.normal(keys[0], (F2, F2), jnp.float32) * std2
    bound2 = 1.0 / (F2 ** 0.5)
    b1b = jax.random.uniform(keys[2], (1, F2), jnp.float32, -bound2, bound2)
    x2 = jax.random.normal(jax.random.PRNGKey(43), (N2, F2), jnp.float32)

    out2 = residual_block(x2, w1b, b1b, gamma, beta, running_mean, running_var, None, None)
    out2 = jax.block_until_ready(out2)
    assert out2.shape == (N2, F2)
    ref2 = _reference(x2, w1b, b1b, gamma, beta, running_mean, running_var, None, None)
    assert jnp.allclose(out2, ref2, atol=1e-4, rtol=1e-4), "identity-path mismatch vs reference"

    print("KERNEL_OK")
</pallas_src>

<mosaic_0001>
module attributes {stable_mosaic.version = 11 : i64} {
  func.func @_residual_block_kernel_ds(%arg0: i32, %arg1: memref<8x32xf32, #tpu.memory_space<vmem>>, %arg2: memref<32x256xf32, #tpu.memory_space<vmem>>, %arg3: memref<1x256xf32, #tpu.memory_space<vmem>>, %arg4: memref<8x128xf32, #tpu.memory_space<vmem>>) attributes {dimension_semantics = [#tpu.dimension_semantics<parallel>], iteration_bounds = array<i64: 1>, scalar_prefetch = 0 : i64, scratch_operands = 0 : i64, tpu.core_type = #tpu.core_type<tc>, window_params = [{transform_indices = @transform_0, window_bounds = array<i64: 8, 32>}, {pipeline_mode = #tpu.pipeline_mode<synchronous>, transform_indices = @transform_1, window_bounds = array<i64: 32, 256>}, {pipeline_mode = #tpu.pipeline_mode<synchronous>, transform_indices = @transform_2, window_bounds = array<i64: 1, 256>}, {transform_indices = @transform_3, window_bounds = array<i64: 8, 128>}]} {
    %c0 = arith.constant 0 : index
    %c0_0 = arith.constant 0 : index
    %0 = vector.load %arg1[%c0, %c0_0] : memref<8x32xf32, #tpu.memory_space<vmem>>, vector<8x32xf32>
    %c0_1 = arith.constant 0 : index
    %c0_2 = arith.constant 0 : index
    %1 = vector.load %arg2[%c0_1, %c0_2] : memref<32x256xf32, #tpu.memory_space<vmem>>, vector<32x256xf32>
    %cst = arith.constant dense<0.000000e+00> : vector<8x256xf32>
    %2 = tpu.matmul %0, %1, %cst {dimension_numbers = #tpu.dot_dimension_numbers<[1], [0], [0], [1], [0, 0, 1, 1], [], []>} : vector<8x32xf32>, vector<32x256xf32>, vector<8x256xf32> -> vector<8x256xf32>
    %c0_3 = arith.constant 0 : index
    %c0_4 = arith.constant 0 : index
    %3 = vector.load %arg3[%c0_3, %c0_4] : memref<1x256xf32, #tpu.memory_space<vmem>>, vector<1x256xf32>
    %4 = vector.broadcast %3 : vector<1x256xf32> to vector<8x256xf32>
    %5 = arith.addf %2, %4 : vector<8x256xf32>
    %6 = vector.extract_strided_slice %5 {offsets = [0, 0], sizes = [8, 128], strides = [1, 1]} : vector<8x256xf32> to vector<8x128xf32>
    %cst_5 = arith.constant 0.000000e+00 : f32
    %7 = vector.broadcast %cst_5 : f32 to vector<8x128xf32>
    %8 = arith.maximumf %6, %7 : vector<8x128xf32>
    %9 = vector.extract_strided_slice %5 {offsets = [0, 128], sizes = [8, 128], strides = [1, 1]} : vector<8x256xf32> to vector<8x128xf32>
    %10 = arith.addf %8, %9 : vector<8x128xf32>
    %cst_6 = arith.constant 0.000000e+00 : f32
    %11 = vector.broadcast %cst_6 : f32 to vector<8x128xf32>
    %12 = arith.maximumf %10, %11 : vector<8x128xf32>
    %c0_7 = arith.constant 0 : index
    %c0_8 = arith.constant 0 : index
    %13 = vector.load %arg4[%c0_7, %c0_8] : memref<8x128xf32, #tpu.memory_space<vmem>>, vector<8x128xf32>
    tpu.vector_store %arg4[%c0_7, %c0_8], %12 {strides = array<i32>} : memref<8x128xf32, #tpu.memory_space<vmem>>, vector<8x128xf32>,
    return
  }
  func.func @transform_0(%arg0: i32) -> (i32, i32) {
    %c0_i32 = arith.constant 0 : i32
    %c0_i32_0 = arith.constant 0 : i32
    return %arg0, %c0_i32 : i32, i32
  }
  func.func @transform_1(%arg0: i32) -> (i32, i32) {
    %c0_i32 = arith.constant 0 : i32
    %c0_i32_0 = arith.constant 0 : i32
    %c0_i32_1 = arith.constant 0 : i32
    return %c0_i32, %c0_i32_0 : i32, i32
  }
  func.func @transform_2(%arg0: i32) -> (i32, i32) {
    %c0_i32 = arith.constant 0 : i32
    %c0_i32_0 = arith.constant 0 : i32
    %c0_i32_1 = arith.constant 0 : i32
    return %c0_i32, %c0_i32_0 : i32, i32
  }
  func.func @transform_3(%arg0: i32) -> (i32, i32) {
    %c0_i32 = arith.constant 0 : i32
    %c0_i32_0 = arith.constant 0 : i32
    return %arg0, %c0_i32 : i32, i32
  }
}

</mosaic_0001>

<llo_original>
// kernel: tpu_custom_call.1
$region0: #{tpu_custom_call.1}
  #allocation0 [shape = 'u32[]', space=smem, size = 0x4, offset = 0x4, fixed_abs, tag = 'smem constant byte address 0x4 - core index']
  #allocation1 [shape = 'u32[144,128]{1,0:T(1,128)}', space=vmem, size = 0x12000, scoped, tag = 'internal scratch']
  %s0 = inlined_call_operand.hbm [shape: f32[8,32], index: 0, kind: input, shape index: {}]
  %s1 = inlined_call_operand.hbm [shape: f32[32,256], index: 1, kind: input, shape index: {}]
  %s2 = inlined_call_operand.vmem [shape: f32[1,256], index: 2, kind: input, shape index: {}]
  %s3 = inlined_call_operand.hbm [shape: f32[8,128], index: 3, kind: output, shape index: {}]
  %s4 = sld [smem:[#allocation0]]
  $region30: #{tpu_custom_call.1} parent=0
    _
  %s6 = ssub.s32 1, %s4
  %s7 = scalar_select 0, %s6, %s4
  $region1: #{tpu_custom_call.1} parent=0
    #allocation2 [shape = 'u8[4096]{0}', space=vmem, size = 0x1000, scoped, tag = 'input window, operand 0, single buffered']
    #allocation3 [shape = 's32[1]{0}', space=sflag, size = 0x4, scoped, tag = 'scoped memory for tpu_custom_call.1']
    #allocation4 [shape = 's32[1]{0}', space=sflag, size = 0x4, scoped, tag = 'scoped memory for tpu_custom_call.1']
    #allocation5 [shape = 'u8[32768]{0}', space=vmem, size = 0x8000, scoped, tag = 'input window, operand 1, single buffered']
    #allocation6 [shape = 's32[1]{0}', space=sflag, size = 0x4, scoped, tag = 'scoped memory for tpu_custom_call.1']
    #allocation7 [shape = 'u8[4096]{0}', space=vmem, size = 0x1000, scoped, tag = 'output window, operand 0, single buffered']
    %8 = vsyncpa [#allocation3], 0
    %9 = vsyncpa [#allocation6], 0
    %10 = vsyncpa [#allocation4], 0
    // Predicated region
    $region2: #{tpu_custom_call.1} parent=1 // pred_check
      _
    $region3: #{tpu_custom_call.1} parent=1 // pred_check_branch
      %12 = sbr.rel (0) target = $region5
    $region4: #{tpu_custom_call.1} parent=1 // pred_region
      %s14 = ssub.s32 128, 128
      %15 = vsyncadd [#allocation3], %s14
      %s17 = sshll.u32 [#allocation2], 4
      %s18 = int_to_ptr.vmem [resolvable:$true] %s17
      %20 = dma.hbm_to_vmem [thread:$0]  %s0, 128, %s18, [#allocation3]
    $region5: #{tpu_custom_call.1} parent=1 // pred_fallthru
      _
    // Predicated region
    $region6: #{tpu_custom_call.1} parent=1 // pred_check
      _
    $region7: #{tpu_custom_call.1} parent=1 // pred_check_branch
      %22 = sbr.rel (0) target = $region9
    $region8: #{tpu_custom_call.1} parent=1 // pred_region
      %s24 = ssub.s32 1024, 1024
      %25 = vsyncadd [#allocation6], %s24
      %s26 = sshll.u32 [#allocation5], 4
      %s27 = int_to_ptr.vmem [resolvable:$true] %s26
      %32 = dma.hbm_to_vmem [thread:$0]  %s1, 1024, %s27, [#allocation6], 256, 256, 16
    $region9: #{tpu_custom_call.1} parent=1 // pred_fallthru
      _
    // Predicated region
    $region10: #{tpu_custom_call.1} parent=1 // pred_check
      _
    $region11: #{tpu_custom_call.1} parent=1 // pred_check_branch
      %34 = sbr.rel (0) target = $region13
    $region12: #{tpu_custom_call.1} parent=1 // pred_region
      _
    $region13: #{tpu_custom_call.1} parent=1 // pred_fallthru
      _
    // Predicated region
    $region14: #{tpu_custom_call.1} parent=1 // pred_check
      _
    $region15: #{tpu_custom_call.1} parent=1 // pred_check_branch
      %36 = sbr.rel (0) target = $region17
    $region16: #{tpu_custom_call.1} parent=1 // pred_region
      %37 = dma.done [#allocation3], 128
    $region17: #{tpu_custom_call.1} parent=1 // pred_fallthru
      _
    // Predicated region
    $region18: #{tpu_custom_call.1} parent=1 // pred_check
      _
    $region19: #{tpu_custom_call.1} parent=1 // pred_check_branch
      %39 = sbr.rel (0) target = $region21
    $region20: #{tpu_custom_call.1} parent=1 // pred_region
      %40 = dma.done [#allocation6], 1024
    $region21: #{tpu_custom_call.1} parent=1 // pred_fallthru
      _
    %v41 = vld [vmem:[#allocation2] sm:$0xff]
    %v42 = vld [vmem:[#allocation5] sm:$0xff]
    %v43 = vld [vmem:[#allocation5 + $0x8] sm:$0xff]
    %v44 = vld [vmem:[#allocation5 + $0x10] sm:$0xff]
    %v45 = vld [vmem:[#allocation5 + $0x18] sm:$0xff]
    %v46 = vld [vmem:[#allocation5 + $0x20] sm:$0xff]
    %v47 = vld [vmem:[#allocation5 + $0x28] sm:$0xff]
    %v48 = vld [vmem:[#allocation5 + $0x30] sm:$0xff]
    %v49 = vld [vmem:[#allocation5 + $0x38] sm:$0xff]
    %v50 = vld [vmem:[%s2] sm:$0x3]
    %v52 = vlaneseq
    %v53 = vshrl.u32 %v52, 7
    %v54 = vsub.s32 0, %v53
    %v55 = vrot.slane %v50, %v54
    %v56 = vlaneseq
    %v57 = vshrl.u32 %v56, 7
    %v58 = vsub.s32 1, %v57
    %v59 = vrot.slane %v50, %v58
    %vm62 = vcmask 261120
    %v64 = vsel %vm62, %v41, 0
    %66 = vmatprep.subr.mxu0 0.0
    %67 = vmatpush1.msra.mxu0 0.0
    %68 = vmatprep.subr.mxu0 0.0
    %69 = vmatpush1.msra.mxu0 0.0
    %70 = vmatprep.subr.mxu0 0.0
    %71 = vmatpush1.msra.mxu0 0.0
    %72 = vmatprep.subr.mxu0 0.0
    %73 = vmatpush1.msra.mxu0 0.0
    %74 = vmatprep.subr.mxu0 0.0
    %75 = vmatpush1.msra.mxu0 0.0
    %76 = vmatprep.subr.mxu0 0.0
    %77 = vmatpush1.msra.mxu0 0.0
    %78 = vmatprep.subr.mxu0 0.0
    %79 = vmatpush1.msra.mxu0 0.0
    %80 = vmatprep.subr.mxu0 0.0
    %81 = vmatpush1.msra.mxu0 0.0
    %82 = vmatprep.subr.mxu0 0.0
    %83 = vmatpush1.msra.mxu0 0.0
    %84 = vmatprep.subr.mxu0 0.0
    %85 = vmatpush1.msra.mxu0 0.0
    %86 = vmatprep.subr.mxu0 0.0
    %87 = vmatpush1.msra.mxu0 0.0
    %88 = vmatprep.subr.mxu0 0.0
    %89 = vmatpush1.msra.mxu0 0.0
    %90 = vmatprep.subr.mxu0 %v49
    %91 = vmatpush1.msra.mxu0 %v48
    %92 = vmatprep.subr.mxu0 %v47
    %93 = vmatpush1.msra.mxu0 %v46
    %94 = vmatprep.subr.mxu0 %v45
    %95 = vmatpush1.msra.mxu0 %v44
    %96 = vmatprep.subr.mxu0 %v43
    %97 = vmatpush1.msra.mxu0 %v42
    %98 = vmatprep.subr.mxu0 0.0
    %99 = vmatpush2.msra.mxu0 0.0
    %100 = vmatprep.subr.mxu0 0.0
    %101 = vmatpush2.msra.mxu0 0.0
    %102 = vmatprep.subr.mxu0 0.0
    %103 = vmatpush2.msra.mxu0 0.0
    %104 = vmatprep.subr.mxu0 0.0
    %105 = vmatpush2.msra.mxu0 0.0
    %106 = vmatprep.subr.mxu0 0.0
    %107 = vmatpush2.msra.mxu0 0.0
    %108 = vmatprep.subr.mxu0 0.0
    %109 = vmatpush2.msra.mxu0 0.0
    %110 = vmatprep.subr.mxu0 0.0
    %111 = vmatpush2.msra.mxu0 0.0
    %112 = vmatprep.subr.mxu0 0.0
    %113 = vmatpush2.msra.mxu0 0.0
    %114 = vmatprep.subr.mxu0 0.0
    %115 = vmatpush2.msra.mxu0 0.0
    %116 = vmatprep.subr.mxu0 0.0
    %117 = vmatpush2.msra.mxu0 0.0
    %118 = vmatprep.subr.mxu0 0.0
    %119 = vmatpush2.msra.mxu0 0.0
    %120 = vmatprep.subr.mxu0 0.0
    %121 = vmatpush2.msra.mxu0 0.0
    %122 = vmatprep.subr.mxu0 0.0
    %123 = vmatpush2.msra.mxu0 0.0
    %124 = vmatprep.subr.mxu0 0.0
    %125 = vmatpush2.msra.mxu0 0.0
    %126 = vmatprep.subr.mxu0 0.0
    %127 = vmatpush2.msra.mxu0 0.0
    %128 = vmatprep.subr.mxu0 0.0
    %129 = vmatpush2.msra.mxu0 0.0
    %130 = vmatprep.mubr.f32.mxu0 0.0
    %131 = vmatmul.mubr.f32.gmra.mxu0 %v64
    %v132 = vpop.f32.mrf.mxu0
    %v133 = vadd.f32 %v55, %v132
    %v134 = vpop.f32.mrf.mxu0
    %v135 = vadd.f32 %v59, %v134
    %136 = vdwg.mxu0
    %v137 = vmax.f32 %v133, 0.0
    %v138 = vadd.f32 %v137, %v135
    %v139 = vmax.f32 %v138, 0.0
    %140 = vst [vmem:[#allocation7] sm:$0xff] %v139
    // Predicated region
    $region22: #{tpu_custom_call.1} parent=1 // pred_check
      _
    $region23: #{tpu_custom_call.1} parent=1 // pred_check_branch
      %142 = sbr.rel (0) target = $region25
    $region24: #{tpu_custom_call.1} parent=1 // pred_region
      %s144 = ssub.s32 128, 128
      %145 = vsyncadd [#allocation4], %s144
      %s147 = sshll.u32 [#allocation7], 4
      %s148 = int_to_ptr.vmem [resolvable:$true] %s147
      %150 = dma.vmem_to_hbm [thread:$0]  %s148, 128, %s3, [#allocation4]
    $region25: #{tpu_custom_call.1} parent=1 // pred_fallthru
      _
    // Predicated region
    $region26: #{tpu_custom_call.1} parent=1 // pred_check
      _
    $region27: #{tpu_custom_call.1} parent=1 // pred_check_branch
      %152 = sbr.rel (0) target = $region29
    $region28: #{tpu_custom_call.1} parent=1 // pred_region
      %153 = dma.done [#allocation4], 128
    $region29: #{tpu_custom_call.1} parent=1 // pred_fallthru
      _
    %154 = vsyncpa [#allocation3], 1
    %155 = vsyncpa [#allocation6], 1
    %156 = vsyncpa [#allocation4], 1

</llo_original>
